<compile_context>
chip_gen: v6e
topology: v6e:2x2x1
jax: 0.10.0
libtpu: 0.0.40
codegen_flags: <defaults>
</compile_context>

<pallas_src>
import functools

import jax
import jax.numpy as jnp
from jax.experimental import pallas as pl
from jax.experimental.pallas import tpu as pltpu


def _decoder_kernel(x_ref, wl_ref, bp_ref, wr_ref, w3_ref, b3_ref,
                    adj_ref, msk_ref, ent_ref,
                    dotl_ref, dotrt_ref, *, bt, n, ti, use_bf16):
    """Grid = (batch steps, row tiles).

    x_ref    : (bt, n, D)   input block of this batch step
    wl_ref   : (D, H)       fc_l weight (stored (in, out))
    bp_ref   : (1, H)       b_l + b_r (pre-summed)
    wr_ref   : (D, H)       fc_r weight
    w3_ref   : (H, 1)       fc_3 weight column
    b3_ref   : (1,) SMEM    fc_3 bias scalar
    outputs  : (bt, ti, n)  full-row blocks of adj_prob / mask_scores / entropy
    scratch  : dotl (bt,n,H) f32, dotr^T (bt,H,n) f32 (persist across row tiles)
    """
    t = pl.program_id(1)

    # ---- Projections: once per batch step, reused by every row tile. -------
    @pl.when(t == 0)
    def _():
        wl = wl_ref[...]
        wr = wr_ref[...]
        bp = bp_ref[...]

        def proj(bi, carry):
            xb = x_ref[bi]                                            # (n, D)
            dotl_ref[bi] = (jnp.dot(xb, wl, preferred_element_type=jnp.float32)
                            + bp)                                     # (n, H)
            r = jnp.dot(xb, wr, preferred_element_type=jnp.float32)   # (n, H)
            dotrt_ref[bi] = r.T        # (H, n): lane dim = n, lane-dense reuse
            return carry

        jax.lax.fori_loop(0, bt, proj, 0, unroll=bt <= 8)

    # ---- Loop invariants for this grid step (hoisted out of the bi loop). --
    pair_dt = jnp.bfloat16 if use_bf16 else jnp.float32
    w3_b = w3_ref[...].astype(pair_dt)[None, :, :]                    # (1, H, 1)
    b3 = b3_ref[0]                                                    # SMEM scalar
    i0 = t * ti
    if ti % 8 == 0:
        i0 = pl.multiple_of(i0, 8)
    rows = jax.lax.broadcasted_iota(jnp.int32, (ti, n), 0) + i0
    cols = jax.lax.broadcasted_iota(jnp.int32, (ti, n), 1)
    offdiag = (rows != cols).astype(jnp.float32)                      # (ti, n)

    # ---- Pairwise tile: (ti, H, n) with the full-N row on the lane dim. ----
    def tile(bi, carry):
        l_t = dotl_ref[bi, pl.ds(i0, ti), :].astype(pair_dt)          # (ti, H)
        r_t = dotrt_ref[bi].astype(pair_dt)                           # (H, n)
        s = jnp.maximum(l_t[:, :, None] + r_t[None, :, :], 0.0)       # (ti, H, n)
        # H-reduction over the sublane dim, accumulated in f32.
        logits = jnp.sum(s * w3_b, axis=1, dtype=jnp.float32) + b3    # (ti, n)
        adj = jax.nn.sigmoid(logits)
        p = adj * offdiag                                             # masked scores
        # Bernoulli entropy from logits: H(sigmoid(z)) = softplus(z) - sigmoid(z)*z
        softplus = jnp.maximum(logits, 0.0) + jnp.log1p(jnp.exp(-jnp.abs(logits)))
        ent = offdiag * (softplus - adj * logits)
        adj_ref[bi] = adj                                             # full-row stores
        msk_ref[bi] = p
        ent_ref[bi] = ent
        return carry

    jax.lax.fori_loop(0, bt, tile, 0, unroll=bt <= 8)


def _tpu_config():
    """Hardware-aware VMEM limit and bf16-pairwise eligibility."""
    kind = ""
    try:
        kind = jax.devices()[0].device_kind.lower()
    except Exception:  # pragma: no cover
        pass
    try:
        vmem_cap = int(pltpu.get_tpu_info().vmem_capacity_bytes)
    except Exception:
        vmem_cap = (128 * 1024 * 1024 if ("v5" in kind or "v6" in kind)
                    else 64 * 1024 * 1024)            # conservative (v7x per-TC)
    vmem_limit = (vmem_cap * 3) // 4                   # 96 MiB v5e/v6e, 48 MiB v7x
    # bf16 VPU exists on v6e/v7x only; keep f32 pairwise math on v5e.
    bf16_pair = any(s in kind for s in ("v6", "v7", "7x"))
    return vmem_limit, bf16_pair


def _choose_tiles(B, N, D, H, vmem_limit_bytes, pair_bytes):
    """Pick (batch elems per step, row-tile height, #row tiles) under VMEM."""
    headroom = 4 * 1024 * 1024
    avail = max(vmem_limit_bytes - headroom, 8 * 1024 * 1024)
    pair_budget = avail // 3

    def pair_cost(ti):
        # ~3 live copies of the (ti, H, N) pairwise tile (s, s*w3, partials).
        return 3 * ti * H * N * pair_bytes

    ti = N
    if pair_cost(N) > pair_budget:
        best = 0
        for cand in range(8, N, 8):
            # Row-tile height must be a multiple of 8 (or the full N) for the
            # (8,128) block rule; keep it a divisor so tiles are never ragged.
            if N % cand == 0 and pair_cost(cand) <= pair_budget:
                best = cand
        ti = best if best else N
    n_row_tiles = N // ti

    def footprint(bt):
        x_blk = 2 * bt * N * D * 4                  # double-buffered input block
        w_blk = 2 * (2 * D * H + 3 * H) * 4         # weights / biases (tiny)
        out_blk = 2 * 3 * bt * ti * N * 4           # 3 double-buffered outputs
        scratch = 2 * bt * N * H * 4                # dot_l + dot_r^T scratch
        return x_blk + w_blk + out_blk + scratch + pair_cost(ti)

    # Keep >= 2 steps on the parallel batch axis so both v7x TensorCores get
    # work; costs at most one extra ~0.35us grid step on single-core chips.
    max_bt = B if B < 2 else max(1, B // 2)
    bt = 1
    for cand in range(1, max_bt + 1):
        if B % cand == 0 and footprint(cand) <= avail:
            bt = cand
    return bt, ti, n_row_tiles


def single_layer_decoder_core(x, wl, bl, wr, br, w3, b3):
    """Pallas call computing adj_prob, mask_scores, entropy; all (B, N, N) f32."""
    B, N, D = x.shape
    H = wl.shape[1]
    vmem_limit, bf16_pair = _tpu_config()
    pair_bytes = 2 if bf16_pair else 4
    bt, ti, n_row_tiles = _choose_tiles(B, N, D, H, vmem_limit, pair_bytes)

    b_pair = (bl + br).reshape(1, H).astype(jnp.float32)   # biases only appear summed
    w3_col = w3.reshape(H, 1).astype(jnp.float32)          # H on the sublane dim
    b3_s = b3.reshape(1).astype(jnp.float32)               # SMEM scalar

    out_sds = jax.ShapeDtypeStruct((B, N, N), jnp.float32)
    kernel = functools.partial(_decoder_kernel, bt=bt, n=N, ti=ti,
                               use_bf16=bf16_pair)

    return pl.pallas_call(
        kernel,
        out_shape=(out_sds, out_sds, out_sds),
        grid_spec=pltpu.PrefetchScalarGridSpec(
            num_scalar_prefetch=0,
            grid=(B // bt, n_row_tiles),
            in_specs=[
                pl.BlockSpec((bt, N, D), lambda b, t: (b, 0, 0)),       # x block
                pl.BlockSpec((D, H), lambda b, t: (0, 0)),              # W_l
                pl.BlockSpec((1, H), lambda b, t: (0, 0)),              # b_l + b_r
                pl.BlockSpec((D, H), lambda b, t: (0, 0)),              # W_r
                pl.BlockSpec((H, 1), lambda b, t: (0, 0)),              # w_3 column
                pl.BlockSpec(memory_space=pltpu.MemorySpace.SMEM),      # b_3 scalar
            ],
            out_specs=[
                pl.BlockSpec((bt, ti, N), lambda b, t: (b, t, 0)),      # adj_prob
                pl.BlockSpec((bt, ti, N), lambda b, t: (b, t, 0)),      # mask_scores
                pl.BlockSpec((bt, ti, N), lambda b, t: (b, t, 0)),      # entropy
            ],
            scratch_shapes=[
                pltpu.VMEM((bt, N, H), jnp.float32),   # dot_l (+ summed bias)
                pltpu.VMEM((bt, H, N), jnp.float32),   # dot_r transposed
            ],
        ),
        compiler_params=pltpu.CompilerParams(
            dimension_semantics=("parallel", "arbitrary"),
            vmem_limit_bytes=vmem_limit),
    )(x, wl, b_pair, wr, w3_col, b3_s)


def _xavier_normal(key, fan_in, fan_out):
    # matches nn.init.xavier_normal_ on a (out, in) weight; returned as (in, out)
    std = (2.0 / (fan_in + fan_out)) ** 0.5
    return std * jax.random.normal(key, (fan_in, fan_out), dtype=jnp.float32)


def init_params(key, n_xdims, hidden):
    k1, k2, k3 = jax.random.split(key, 3)
    wl = _xavier_normal(k1, n_xdims, hidden)
    wr = _xavier_normal(k2, n_xdims, hidden)
    w3 = _xavier_normal(k3, hidden, 1).reshape(1, hidden)   # fc_3 weight, (1, H)
    bl = jnp.zeros((1, hidden), jnp.float32)
    br = jnp.zeros((1, hidden), jnp.float32)
    b3 = jnp.zeros((1,), jnp.float32)
    return wl, bl, wr, br, w3, b3


def single_layer_decoder_forward(x, params, sample_key):
    """Full forward matching the PyTorch module's return structure."""
    wl, bl, wr, br, w3, b3 = params
    adj_prob, mask_scores, entropy = single_layer_decoder_core(
        x, wl, bl, wr, br, w3, b3)
    # TODO(synk): reference draws N per-row torch Bernoulli samples; this is one
    # vectorized draw over (B, N, N) — same distribution (diagonal p = 0 always
    # samples 0), different RNG stream, so not bit-identical to torch.
    samples_all = jax.random.bernoulli(sample_key,
                                       mask_scores).astype(jnp.float32)
    _, N, _ = adj_prob.shape
    samples = [samples_all[:, i, :] for i in range(N)]
    mask_list = [mask_scores[:, i, :] for i in range(N)]
    ent_list = [entropy[:, i, :] for i in range(N)]
    return samples, mask_list, ent_list, adj_prob


if __name__ == "__main__":
    # small, module-consistent shapes
    B, node_num, n_xdims, hidden = 2, 8, 4, 32

    key = jax.random.PRNGKey(0)
    k_param, k_input, k_sample = jax.random.split(key, 3)

    params = init_params(k_param, n_xdims, hidden)
    x = jax.random.normal(k_input, (B, node_num, n_xdims), dtype=jnp.float32)

    forward = jax.jit(single_layer_decoder_forward)
    samples, mask_scores, entropy, adj_prob = forward(x, params, k_sample)

    jax.block_until_ready(adj_prob)
    jax.block_until_ready(samples[-1])
    jax.block_until_ready(entropy[-1])

    assert adj_prob.shape == (B, node_num, node_num)
    assert len(samples) == node_num and samples[0].shape == (B, node_num)
    assert entropy[0].shape == (B, node_num)
    print("KERNEL_OK")
</pallas_src>

<mosaic_0001>
module attributes {stable_mosaic.version = 11 : i64} {
  func.func @_decoder_kernel(%arg0: i32, %arg1: i32, %arg2: memref<1x8x4xf32, #tpu.memory_space<vmem>>, %arg3: memref<4x32xf32, #tpu.memory_space<vmem>>, %arg4: memref<1x32xf32, #tpu.memory_space<vmem>>, %arg5: memref<4x32xf32, #tpu.memory_space<vmem>>, %arg6: memref<32x1xf32, #tpu.memory_space<vmem>>, %arg7: memref<1xf32, #tpu.memory_space<smem>>, %arg8: memref<1x8x8xf32, #tpu.memory_space<vmem>>, %arg9: memref<1x8x8xf32, #tpu.memory_space<vmem>>, %arg10: memref<1x8x8xf32, #tpu.memory_space<vmem>>, %arg11: memref<1x8x32xf32, #tpu.memory_space<vmem>>, %arg12: memref<1x32x8xf32, #tpu.memory_space<vmem>>) attributes {dimension_semantics = [#tpu.dimension_semantics<parallel>, #tpu.dimension_semantics<arbitrary>], iteration_bounds = array<i64: 2, 1>, scalar_prefetch = 0 : i64, scratch_operands = 2 : i64, tpu.core_type = #tpu.core_type<tc>, window_params = [{transform_indices = @transform_0, window_bounds = array<i64: 1, 8, 4>}, {pipeline_mode = #tpu.pipeline_mode<synchronous>, transform_indices = @transform_1, window_bounds = array<i64: 4, 32>}, {pipeline_mode = #tpu.pipeline_mode<synchronous>, transform_indices = @transform_2, window_bounds = array<i64: 1, 32>}, {pipeline_mode = #tpu.pipeline_mode<synchronous>, transform_indices = @transform_3, window_bounds = array<i64: 4, 32>}, {pipeline_mode = #tpu.pipeline_mode<synchronous>, transform_indices = @transform_4, window_bounds = array<i64: 32, 1>}, {transform_indices = @transform_5, window_bounds = array<i64: 1>}, {transform_indices = @transform_6, window_bounds = array<i64: 1, 8, 8>}, {transform_indices = @transform_7, window_bounds = array<i64: 1, 8, 8>}, {transform_indices = @transform_8, window_bounds = array<i64: 1, 8, 8>}]} {
    %c0_i32 = arith.constant 0 : i32
    %0 = arith.cmpi eq, %arg1, %c0_i32 : i32
    %1 = arith.extui %0 : i1 to i32
    %c0_i32_0 = arith.constant 0 : i32
    %2 = arith.cmpi ne, %1, %c0_i32_0 : i32
    scf.if %2 {
      %c0_17 = arith.constant 0 : index
      %c0_18 = arith.constant 0 : index
      %63 = vector.load %arg3[%c0_17, %c0_18] : memref<4x32xf32, #tpu.memory_space<vmem>>, vector<4x32xf32>
      %c0_19 = arith.constant 0 : index
      %c0_20 = arith.constant 0 : index
      %64 = vector.load %arg5[%c0_19, %c0_20] : memref<4x32xf32, #tpu.memory_space<vmem>>, vector<4x32xf32>
      %c0_21 = arith.constant 0 : index
      %c0_22 = arith.constant 0 : index
      %65 = vector.load %arg4[%c0_21, %c0_22] : memref<1x32xf32, #tpu.memory_space<vmem>>, vector<1x32xf32>
      %c0_i32_23 = arith.constant 0 : i32
      %66 = arith.index_cast %c0_i32_23 : i32 to index
      %c0_24 = arith.constant 0 : index
      %c0_25 = arith.constant 0 : index
      %67 = vector.load %arg2[%66, %c0_24, %c0_25] : memref<1x8x4xf32, #tpu.memory_space<vmem>>, vector<1x8x4xf32>
      %68 = vector.shape_cast %67 : vector<1x8x4xf32> to vector<8x4xf32>
      %cst_26 = arith.constant dense<0.000000e+00> : vector<8x32xf32>
      %69 = tpu.matmul %68, %63, %cst_26 {dimension_numbers = #tpu.dot_dimension_numbers<[1], [0], [0], [1], [0, 0, 1, 1], [], []>} : vector<8x4xf32>, vector<4x32xf32>, vector<8x32xf32> -> vector<8x32xf32>
      %70 = vector.broadcast %65 : vector<1x32xf32> to vector<8x32xf32>
      %71 = arith.addf %69, %70 : vector<8x32xf32>
      %72 = arith.index_cast %c0_i32_23 : i32 to index
      %c0_27 = arith.constant 0 : index
      %c0_28 = arith.constant 0 : index
      %73 = vector.load %arg11[%72, %c0_27, %c0_28] : memref<1x8x32xf32, #tpu.memory_space<vmem>>, vector<1x8x32xf32>
      %74 = vector.shape_cast %73 : vector<1x8x32xf32> to vector<8x32xf32>
      %75 = vector.shape_cast %71 : vector<8x32xf32> to vector<1x8x32xf32>
      tpu.vector_store %arg11[%72, %c0_27, %c0_28], %75 {strides = array<i32>} : memref<1x8x32xf32, #tpu.memory_space<vmem>>, vector<1x8x32xf32>,
      %cst_29 = arith.constant dense<0.000000e+00> : vector<8x32xf32>
      %76 = tpu.matmul %68, %64, %cst_29 {dimension_numbers = #tpu.dot_dimension_numbers<[1], [0], [0], [1], [0, 0, 1, 1], [], []>} : vector<8x4xf32>, vector<4x32xf32>, vector<8x32xf32> -> vector<8x32xf32>
      %77 = tpu.transpose %76, [1, 0] : vector<8x32xf32> -> vector<32x8xf32>
      %78 = arith.index_cast %c0_i32_23 : i32 to index
      %c0_30 = arith.constant 0 : index
      %c0_31 = arith.constant 0 : index
      %79 = vector.load %arg12[%78, %c0_30, %c0_31] : memref<1x32x8xf32, #tpu.memory_space<vmem>>, vector<1x32x8xf32>
      %80 = vector.shape_cast %79 : vector<1x32x8xf32> to vector<32x8xf32>
      %81 = vector.shape_cast %77 : vector<32x8xf32> to vector<1x32x8xf32>
      tpu.vector_store %arg12[%78, %c0_30, %c0_31], %81 {strides = array<i32>} : memref<1x32x8xf32, #tpu.memory_space<vmem>>, vector<1x32x8xf32>,
      %c1_i32_32 = arith.constant 1 : i32
    } else {
    }
    %c0 = arith.constant 0 : index
    %c0_1 = arith.constant 0 : index
    %3 = vector.load %arg6[%c0, %c0_1] : memref<32x1xf32, #tpu.memory_space<vmem>>, vector<32x1xf32>
    %4 = vector.shape_cast %3 : vector<32x1xf32> to vector<1x32x1xf32>
    %c0_2 = arith.constant 0 : index
    %5 = memref.load %arg7[%c0_2] : memref<1xf32, #tpu.memory_space<smem>>
    %c8_i32 = arith.constant 8 : i32
    %6 = arith.muli %arg1, %c8_i32 : i32
    %7 = tpu.assume_multiple %6, 8 : i32
    %8 = tpu.iota {dimensions = array<i32: 0>} : vector<8x8xi32>
    %9 = vector.broadcast %7 : i32 to vector<8x8xi32>
    %10 = arith.addi %8, %9 : vector<8x8xi32>
    %11 = tpu.iota {dimensions = array<i32: 1>} : vector<8x8xi32>
    %12 = arith.cmpi ne, %10, %11 : vector<8x8xi32>
    %13 = arith.extui %12 : vector<8x8xi1> to vector<8x8xi32>
    %14 = arith.sitofp %13 : vector<8x8xi32> to vector<8x8xf32>
    %c0_i32_3 = arith.constant 0 : i32
    %15 = arith.index_cast %c0_i32_3 : i32 to index
    %16 = arith.index_cast %7 : i32 to index
    %c0_4 = arith.constant 0 : index
    %17 = vector.load %arg11[%15, %16, %c0_4] : memref<1x8x32xf32, #tpu.memory_space<vmem>>, vector<1x8x32xf32>
    %18 = vector.shape_cast %17 : vector<1x8x32xf32> to vector<8x32xf32>
    %19 = arith.index_cast %c0_i32_3 : i32 to index
    %c0_5 = arith.constant 0 : index
    %c0_6 = arith.constant 0 : index
    %20 = vector.load %arg12[%19, %c0_5, %c0_6] : memref<1x32x8xf32, #tpu.memory_space<vmem>>, vector<1x32x8xf32>
    %21 = vector.shape_cast %20 : vector<1x32x8xf32> to vector<32x8xf32>
    %22 = vector.shape_cast %18 : vector<8x32xf32> to vector<8x32x1xf32>
    %23 = vector.shape_cast %21 : vector<32x8xf32> to vector<1x32x8xf32>
    %24 = vector.broadcast %22 : vector<8x32x1xf32> to vector<8x32x8xf32>
    %25 = vector.broadcast %23 : vector<1x32x8xf32> to vector<8x32x8xf32>
    %26 = arith.addf %24, %25 : vector<8x32x8xf32>
    %cst = arith.constant 0.000000e+00 : f32
    %27 = vector.broadcast %cst : f32 to vector<8x32x8xf32>
    %28 = arith.maximumf %26, %27 : vector<8x32x8xf32>
    %29 = vector.broadcast %4 : vector<1x32x1xf32> to vector<8x32x8xf32>
    %30 = arith.mulf %28, %29 : vector<8x32x8xf32>
    %cst_7 = arith.constant dense<0.000000e+00> : vector<8x8xf32>
    %31 = vector.multi_reduction <add>, %30, %cst_7 [1] : vector<8x32x8xf32> to vector<8x8xf32>
    %32 = vector.broadcast %5 : f32 to vector<8x8xf32>
    %33 = arith.addf %31, %32 : vector<8x8xf32>
    %34 = arith.negf %33 : vector<8x8xf32>
    %35 = math.exp %34 : vector<8x8xf32>
    %cst_8 = arith.constant 1.000000e+00 : f32
    %36 = vector.broadcast %cst_8 : f32 to vector<8x8xf32>
    %37 = arith.addf %36, %35 : vector<8x8xf32>
    %38 = arith.divf %36, %37 : vector<8x8xf32>
    %39 = arith.mulf %38, %14 : vector<8x8xf32>
    %cst_9 = arith.constant 0.000000e+00 : f32
    %40 = vector.broadcast %cst_9 : f32 to vector<8x8xf32>
    %41 = arith.maximumf %33, %40 : vector<8x8xf32>
    %42 = math.absf %33 : vector<8x8xf32>
    %cst_10 = arith.constant 0.000000e+00 : f32
    %43 = vector.broadcast %cst_10 : f32 to vector<8x8xf32>
    %44 = arith.subf %43, %42 : vector<8x8xf32>
    %45 = math.exp %44 : vector<8x8xf32>
    %46 = math.log1p %45 : vector<8x8xf32>
    %47 = arith.addf %41, %46 : vector<8x8xf32>
    %48 = arith.mulf %38, %33 : vector<8x8xf32>
    %49 = arith.subf %47, %48 : vector<8x8xf32>
    %50 = arith.mulf %14, %49 : vector<8x8xf32>
    %51 = arith.index_cast %c0_i32_3 : i32 to index
    %c0_11 = arith.constant 0 : index
    %c0_12 = arith.constant 0 : index
    %52 = vector.load %arg8[%51, %c0_11, %c0_12] : memref<1x8x8xf32, #tpu.memory_space<vmem>>, vector<1x8x8xf32>
    %53 = vector.shape_cast %52 : vector<1x8x8xf32> to vector<8x8xf32>
    %54 = vector.shape_cast %38 : vector<8x8xf32> to vector<1x8x8xf32>
    tpu.vector_store %arg8[%51, %c0_11, %c0_12], %54 {strides = array<i32>} : memref<1x8x8xf32, #tpu.memory_space<vmem>>, vector<1x8x8xf32>,
    %55 = arith.index_cast %c0_i32_3 : i32 to index
    %c0_13 = arith.constant 0 : index
    %c0_14 = arith.constant 0 : index
    %56 = vector.load %arg9[%55, %c0_13, %c0_14] : memref<1x8x8xf32, #tpu.memory_space<vmem>>, vector<1x8x8xf32>
    %57 = vector.shape_cast %56 : vector<1x8x8xf32> to vector<8x8xf32>
    %58 = vector.shape_cast %39 : vector<8x8xf32> to vector<1x8x8xf32>
    tpu.vector_store %arg9[%55, %c0_13, %c0_14], %58 {strides = array<i32>} : memref<1x8x8xf32, #tpu.memory_space<vmem>>, vector<1x8x8xf32>,
    %59 = arith.index_cast %c0_i32_3 : i32 to index
    %c0_15 = arith.constant 0 : index
    %c0_16 = arith.constant 0 : index
    %60 = vector.load %arg10[%59, %c0_15, %c0_16] : memref<1x8x8xf32, #tpu.memory_space<vmem>>, vector<1x8x8xf32>
    %61 = vector.shape_cast %60 : vector<1x8x8xf32> to vector<8x8xf32>
    %62 = vector.shape_cast %50 : vector<8x8xf32> to vector<1x8x8xf32>
    tpu.vector_store %arg10[%59, %c0_15, %c0_16], %62 {strides = array<i32>} : memref<1x8x8xf32, #tpu.memory_space<vmem>>, vector<1x8x8xf32>,
    %c1_i32 = arith.constant 1 : i32
    return
  }
  func.func @transform_0(%arg0: i32, %arg1: i32) -> (i32, i32, i32) {
    %c0_i32 = arith.constant 0 : i32
    %c0_i32_0 = arith.constant 0 : i32
    %c0_i32_1 = arith.constant 0 : i32
    return %arg0, %c0_i32, %c0_i32_0 : i32, i32, i32
  }
  func.func @transform_1(%arg0: i32, %arg1: i32) -> (i32, i32) {
    %c0_i32 = arith.constant 0 : i32
    %c0_i32_0 = arith.constant 0 : i32
    %c0_i32_1 = arith.constant 0 : i32
    return %c0_i32, %c0_i32_0 : i32, i32
  }
  func.func @transform_2(%arg0: i32, %arg1: i32) -> (i32, i32) {
    %c0_i32 = arith.constant 0 : i32
    %c0_i32_0 = arith.constant 0 : i32
    %c0_i32_1 = arith.constant 0 : i32
    return %c0_i32, %c0_i32_0 : i32, i32
  }
  func.func @transform_3(%arg0: i32, %arg1: i32) -> (i32, i32) {
    %c0_i32 = arith.constant 0 : i32
    %c0_i32_0 = arith.constant 0 : i32
    %c0_i32_1 = arith.constant 0 : i32
    return %c0_i32, %c0_i32_0 : i32, i32
  }
  func.func @transform_4(%arg0: i32, %arg1: i32) -> (i32, i32) {
    %c0_i32 = arith.constant 0 : i32
    %c0_i32_0 = arith.constant 0 : i32
    %c0_i32_1 = arith.constant 0 : i32
    return %c0_i32, %c0_i32_0 : i32, i32
  }
  func.func @transform_5(%arg0: i32, %arg1: i32) -> i32 {
    %c0_i32 = arith.constant 0 : i32
    %c0_i32_0 = arith.constant 0 : i32
    return %c0_i32 : i32
  }
  func.func @transform_6(%arg0: i32, %arg1: i32) -> (i32, i32, i32) {
    %c0_i32 = arith.constant 0 : i32
    %c0_i32_0 = arith.constant 0 : i32
    return %arg0, %arg1, %c0_i32 : i32, i32, i32
  }
  func.func @transform_7(%arg0: i32, %arg1: i32) -> (i32, i32, i32) {
    %c0_i32 = arith.constant 0 : i32
    %c0_i32_0 = arith.constant 0 : i32
    return %arg0, %arg1, %c0_i32 : i32, i32, i32
  }
  func.func @transform_8(%arg0: i32, %arg1: i32) -> (i32, i32, i32) {
    %c0_i32 = arith.constant 0 : i32
    %c0_i32_0 = arith.constant 0 : i32
    return %arg0, %arg1, %c0_i32 : i32, i32, i32
  }
}

</mosaic_0001>

<llo_original>
// kernel: single_layer_decoder_forward.1
$region0: #{single_layer_decoder_forward.1}
  #allocation0 [shape = 'u32[]', space=smem, size = 0x4, offset = 0x4, fixed_abs, tag = 'smem constant byte address 0x4 - core index']
  #allocation1 [shape = 'u32[144,128]{1,0:T(1,128)}', space=vmem, size = 0x12000, scoped, tag = 'internal scratch']
  #allocation2 [shape = 'f32[1,8,32]{2,1,0:T(8,128)}', space=vmem, size = 0x1000, scoped, tag = 'scratch operand']
  #allocation3 [shape = 'f32[1,32,8]{2,1,0:T(8,128)}', space=vmem, size = 0x4000, scoped, tag = 'scratch operand']
  #allocation4 [shape = 'f32[1]{0:T(128)S(6)}', space=smem, size = 0x200, scoped, tag = 'scoped memory for single_layer_decoder_forward.1']
  %s0 = inlined_call_operand.vmem [shape: f32[2,8,4], index: 0, kind: input, shape index: {}]
  %s1 = inlined_call_operand.vmem [shape: f32[4,32], index: 1, kind: input, shape index: {}]
  %s2 = inlined_call_operand.vmem [shape: f32[1,32], index: 2, kind: input, shape index: {}]
  %s3 = inlined_call_operand.vmem [shape: f32[4,32], index: 3, kind: input, shape index: {}]
  %s4 = inlined_call_operand.vmem [shape: f32[32,1], index: 4, kind: input, shape index: {}]
  %s5 = inlined_call_operand.<no memory space> [shape: f32[1], index: 5, kind: input, shape index: {}]
  %s6 = inlined_call_operand.hbm [shape: f32[2,8,8], index: 6, kind: output, shape index: {0}]
  %s7 = inlined_call_operand.vmem [shape: f32[2,8,8], index: 7, kind: output, shape index: {1}]
  %s8 = inlined_call_operand.vmem [shape: f32[2,8,8], index: 8, kind: output, shape index: {2}]
  %9 = xla_tuple %s6, %s7, %s8
  %s10 = sld [smem:[#allocation0]]
  $region77: #{single_layer_decoder_forward.1} parent=0
    _
  %s12 = ssub.s32 1, %s10
  %s13 = scalar_select 0, %s12, %s10
  %14 = sst [smem:[#allocation4]] %s5
  $region1: #{single_layer_decoder_forward.1} parent=0
    #allocation5 [shape = 'u8[8192]{0}', space=vmem, size = 0x2000, scoped, tag = 'output window, operand 0']
    #allocation6 [shape = 's32[2]{0}', space=sflag, size = 0x8, scoped, tag = 'scoped memory for single_layer_decoder_forward.1']
    %15 = vsyncpa [#allocation6], 0
    %s16 = scalar_lea.sflag [#allocation6], 1
    %17 = vsyncpa %s16, 0
    loop: start=0, step=1, limit=4
    $region2: #{single_layer_decoder_forward.1} parent=1 // loop_pre_header
      _
    $region3: #{single_layer_decoder_forward.1} parent=1 // loop_header
      %s19 = sphi 0, %s23
      %p20 = scmp.ge.s32.totalorder %s19, 4
      %s26 = sphi 0, %s38
      %s27 = sphi 0, %s34
      %s28 = sphi 0, %s26
      %s29 = sphi 0, %s27
      %s30 = sphi 0, %s28
      %s31 = sphi 0, %s29
      %s41 = sphi 0, %s43
      %s44 = sphi 0, %s41
      %s45 = sphi 0, %s44
      %s61 = sphi 0, %s45
      %s65 = sphi 0, %s65
      %s67 = sphi 0, %s65
      %s68 = sphi 0, %s67
      %s82 = sphi 0, %s68
      %s86 = sphi 0, %s86
      %s88 = sphi 0, %s86
      %s89 = sphi 0, %s88
      %s103 = sphi 0, %s89
      %s107 = sphi 0, %s107
      %s109 = sphi 0, %s107
      %s110 = sphi 0, %s109
      %s124 = sphi 0, %s110
      %s128 = sphi 0, %s128
      %s130 = sphi 0, %s128
      %s131 = sphi 0, %s130
      %s145 = sphi 0, %s131
      %s149 = sphi 0, %s149
      %s151 = sphi 0, %s149
      %s152 = sphi 0, %s151
      %s166 = sphi 0, %s152
      %s174 = sphi 0, %s176
      %s177 = sphi 0, %s174
      %s178 = sphi 0, %s177
      %s194 = sphi 0, %s178
      %s202 = sphi 0, %s204
      %s205 = sphi 0, %s202
      %s206 = sphi 0, %s205
      %s222 = sphi 0, %s206
      %s230 = sphi 0, %s232
      %s233 = sphi 0, %s230
      %s234 = sphi 0, %s233
      %s250 = sphi 0, %s234
    $region4: #{single_layer_decoder_forward.1} parent=1 // loop_header_branch
      %22 = sbr.rel (%p20) target = $region8
    $region5: #{single_layer_decoder_forward.1} parent=1 // loop_body
      %s24 = ssub.s32 %s19, 1
      %s25 = ssub.s32 %s19, 2
      %s32 = sadd.s32 1, %s27
      %p33 = scmp.ge.s32.totalorder %s32, 1
      %s34 = scalar_select %p33, 0, %s32
      %s35 = sadd.s32 1, %s26
      %s36 = scalar_select %p33, %s35, %s26
      %p37 = scmp.ge.s32.totalorder %s36, 2
      %s38 = scalar_select %p37, 0, %s36
      %s39 = ssub.s32 %s26, %s38
      %p40 = scmp.eq.s32.totalorder %s39, 0
      %s42 = sadd.s32 %s41, 1
      %s43 = scalar_select %p40, %s41, %s42
      %p46 = pneg %p40
      %p47 = scmp.eq.s32.totalorder %s19, 1
      %p48 = por %p46, %p47
      %p49 = scmp.ne.s32.totalorder %s41, %s44
      %p50 = scmp.eq.s32.totalorder %s19, 0
      %p51 = por %p49, %p50
      %p52 = scmp.ne.s32.totalorder %s41, %s44
      %p53 = scmp.eq.s32.totalorder %s24, 1
      %p54 = por %p52, %p53
      %p55 = scmp.ne.s32.totalorder %s44, %s45
      %p56 = scmp.eq.s32.totalorder %s24, 0
      %p57 = por %p55, %p56
      %p58 = scmp.ne.s32.totalorder %s44, %s45
      %p59 = scmp.eq.s32.totalorder %s25, 1
      %p60 = por %p58, %p59
      %p62 = scmp.ne.s32.totalorder %s45, %s61
      %p63 = scmp.eq.s32.totalorder %s25, 0
      %p64 = por %p62, %p63
      %s66 = sadd.s32 %s65, 1
      %p69 = scmp.eq.s32.totalorder %s19, 1
      %p70 = scmp.ne.s32.totalorder %s65, %s67
      %p71 = scmp.eq.s32.totalorder %s19, 0
      %p72 = por %p70, %p71
      %p73 = scmp.ne.s32.totalorder %s65, %s67
      %p74 = scmp.eq.s32.totalorder %s24, 1
      %p75 = por %p73, %p74
      %p76 = scmp.ne.s32.totalorder %s67, %s68
      %p77 = scmp.eq.s32.totalorder %s24, 0
      %p78 = por %p76, %p77
      %p79 = scmp.ne.s32.totalorder %s67, %s68
      %p80 = scmp.eq.s32.totalorder %s25, 1
      %p81 = por %p79, %p80
      %p83 = scmp.ne.s32.totalorder %s68, %s82
      %p84 = scmp.eq.s32.totalorder %s25, 0
      %p85 = por %p83, %p84
      %s87 = sadd.s32 %s86, 1
      %p90 = scmp.eq.s32.totalorder %s19, 1
      %p91 = scmp.ne.s32.totalorder %s86, %s88
      %p92 = scmp.eq.s32.totalorder %s19, 0
      %p93 = por %p91, %p92
      %p94 = scmp.ne.s32.totalorder %s86, %s88
      %p95 = scmp.eq.s32.totalorder %s24, 1
      %p96 = por %p94, %p95
      %p97 = scmp.ne.s32.totalorder %s88, %s89
      %p98 = scmp.eq.s32.totalorder %s24, 0
      %p99 = por %p97, %p98
      %p100 = scmp.ne.s32.totalorder %s88, %s89
      %p101 = scmp.eq.s32.totalorder %s25, 1
      %p102 = por %p100, %p101
      %p104 = scmp.ne.s32.totalorder %s89, %s103
      %p105 = scmp.eq.s32.totalorder %s25, 0
      %p106 = por %p104, %p105
      %s108 = sadd.s32 %s107, 1
      %p111 = scmp.eq.s32.totalorder %s19, 1
      %p112 = scmp.ne.s32.totalorder %s107, %s109
      %p113 = scmp.eq.s32.totalorder %s19, 0
      %p114 = por %p112, %p113
      %p115 = scmp.ne.s32.totalorder %s107, %s109
      %p116 = scmp.eq.s32.totalorder %s24, 1
      %p117 = por %p115, %p116
      %p118 = scmp.ne.s32.totalorder %s109, %s110
      %p119 = scmp.eq.s32.totalorder %s24, 0
      %p120 = por %p118, %p119
      %p121 = scmp.ne.s32.totalorder %s109, %s110
      %p122 = scmp.eq.s32.totalorder %s25, 1
      %p123 = por %p121, %p122
      %p125 = scmp.ne.s32.totalorder %s110, %s124
      %p126 = scmp.eq.s32.totalorder %s25, 0
      %p127 = por %p125, %p126
      %s129 = sadd.s32 %s128, 1
      %p132 = scmp.eq.s32.totalorder %s19, 1
      %p133 = scmp.ne.s32.totalorder %s128, %s130
      %p134 = scmp.eq.s32.totalorder %s19, 0
      %p135 = por %p133, %p134
      %p136 = scmp.ne.s32.totalorder %s128, %s130
      %p137 = scmp.eq.s32.totalorder %s24, 1
      %p138 = por %p136, %p137
      %p139 = scmp.ne.s32.totalorder %s130, %s131
      %p140 = scmp.eq.s32.totalorder %s24, 0
      %p141 = por %p139, %p140
      %p142 = scmp.ne.s32.totalorder %s130, %s131
      %p143 = scmp.eq.s32.totalorder %s25, 1
      %p144 = por %p142, %p143
      %p146 = scmp.ne.s32.totalorder %s131, %s145
      %p147 = scmp.eq.s32.totalorder %s25, 0
      %p148 = por %p146, %p147
      %s150 = sadd.s32 %s149, 1
      %p153 = scmp.eq.s32.totalorder %s19, 1
      %p154 = scmp.ne.s32.totalorder %s149, %s151
      %p155 = scmp.eq.s32.totalorder %s19, 0
      %p156 = por %p154, %p155
      %p157 = scmp.ne.s32.totalorder %s149, %s151
      %p158 = scmp.eq.s32.totalorder %s24, 1
      %p159 = por %p157, %p158
      %p160 = scmp.ne.s32.totalorder %s151, %s152
      %p161 = scmp.eq.s32.totalorder %s24, 0
      %p162 = por %p160, %p161
      %p163 = scmp.ne.s32.totalorder %s151, %s152
      %p164 = scmp.eq.s32.totalorder %s25, 1
      %p165 = por %p163, %p164
      %p167 = scmp.ne.s32.totalorder %s152, %s166
      %p168 = scmp.eq.s32.totalorder %s25, 0
      %p169 = por %p167, %p168
      %s170 = ssub.s32 %s26, %s38
      %s171 = ssub.s32 %s27, %s34
      %s172 = sor.u32 %s170, %s171
      %p173 = scmp.eq.s32.totalorder %s172, 0
      %s175 = sadd.s32 %s174, 1
      %s176 = scalar_select %p173, %s174, %s175
      %p179 = pneg %p173
      %p180 = scmp.eq.s32.totalorder %s19, 1
      %p181 = por %p179, %p180
      %p182 = scmp.ne.s32.totalorder %s174, %s177
      %p183 = scmp.eq.s32.totalorder %s19, 0
      %p184 = por %p182, %p183
      %p185 = scmp.ne.s32.totalorder %s174, %s177
      %p186 = scmp.eq.s32.totalorder %s24, 1
      %p187 = por %p185, %p186
      %p188 = scmp.ne.s32.totalorder %s177, %s178
      %p189 = scmp.eq.s32.totalorder %s24, 0
      %p190 = por %p188, %p189
      %p191 = scmp.ne.s32.totalorder %s177, %s178
      %p192 = scmp.eq.s32.totalorder %s25, 1
      %p193 = por %p191, %p192
      %p195 = scmp.ne.s32.totalorder %s178, %s194
      %p196 = scmp.eq.s32.totalorder %s25, 0
      %p197 = por %p195, %p196
      %s198 = ssub.s32 %s26, %s38
      %s199 = ssub.s32 %s27, %s34
      %s200 = sor.u32 %s198, %s199
      %p201 = scmp.eq.s32.totalorder %s200, 0
      %s203 = sadd.s32 %s202, 1
      %s204 = scalar_select %p201, %s202, %s203
      %p207 = pneg %p201
      %p208 = scmp.eq.s32.totalorder %s19, 1
      %p209 = por %p207, %p208
      %p210 = scmp.ne.s32.totalorder %s202, %s205
      %p211 = scmp.eq.s32.totalorder %s19, 0
      %p212 = por %p210, %p211
      %p213 = scmp.ne.s32.totalorder %s202, %s205
      %p214 = scmp.eq.s32.totalorder %s24, 1
      %p215 = por %p213, %p214
      %p216 = scmp.ne.s32.totalorder %s205, %s206
      %p217 = scmp.eq.s32.totalorder %s24, 0
      %p218 = por %p216, %p217
      %p219 = scmp.ne.s32.totalorder %s205, %s206
      %p220 = scmp.eq.s32.totalorder %s25, 1
      %p221 = por %p219, %p220
      %p223 = scmp.ne.s32.totalorder %s206, %s222
      %p224 = scmp.eq.s32.totalorder %s25, 0
      %p225 = por %p223, %p224
      %s226 = ssub.s32 %s26, %s38
      %s227 = ssub.s32 %s27, %s34
      %s228 = sor.u32 %s226, %s227
      %p229 = scmp.eq.s32.totalorder %s228, 0
      %s231 = sadd.s32 %s230, 1
      %s232 = scalar_select %p229, %s230, %s231
      %p235 = pneg %p229
      %p236 = scmp.eq.s32.totalorder %s19, 1
      %p237 = por %p235, %p236
      %p238 = scmp.ne.s32.totalorder %s230, %s233
      %p239 = scmp.eq.s32.totalorder %s19, 0
      %p240 = por %p238, %p239
      %p241 = scmp.ne.s32.totalorder %s230, %s233
      %p242 = scmp.eq.s32.totalorder %s24, 1
      %p243 = por %p241, %p242
      %p244 = scmp.ne.s32.totalorder %s233, %s234
      %p245 = scmp.eq.s32.totalorder %s24, 0
      %p246 = por %p244, %p245
      %p247 = scmp.ne.s32.totalorder %s233, %s234
      %p248 = scmp.eq.s32.totalorder %s25, 1
      %p249 = por %p247, %p248
      %p251 = scmp.ne.s32.totalorder %s234, %s250
      %p252 = scmp.eq.s32.totalorder %s25, 0
      %p253 = por %p251, %p252
      %p254 = scmp.le.s32.totalorder 1, %s19
      %p255 = scmp.lt.s32.totalorder %s19, 3
      %p256 = pnand %p254, %p255
      %p257 = pneg %p256
      // Predicated region
      $region9: #{single_layer_decoder_forward.1} parent=5 // pred_check
        _
      $region10: #{single_layer_decoder_forward.1} parent=5 // pred_check_branch
        %259 = sbr.rel (%p256) target = $region12
      $region11: #{single_layer_decoder_forward.1} parent=5 // pred_region
        %s260 = ssub.s32 %s19, 1
        // Predicated region
        $region13: #{single_layer_decoder_forward.1} parent=11 // pred_check
          %p261 = pneg %p78
        $region14: #{single_layer_decoder_forward.1} parent=11 // pred_check_branch
          %263 = sbr.rel (%p261) target = $region16
        $region15: #{single_layer_decoder_forward.1} parent=11 // pred_region
          _
        $region16: #{single_layer_decoder_forward.1} parent=11 // pred_fallthru
          _
        // Predicated region
        $region17: #{single_layer_decoder_forward.1} parent=11 // pred_check
          %p264 = pneg %p99
        $region18: #{single_layer_decoder_forward.1} parent=11 // pred_check_branch
          %266 = sbr.rel (%p264) target = $region20
        $region19: #{single_layer_decoder_forward.1} parent=11 // pred_region
          _
        $region20: #{single_layer_decoder_forward.1} parent=11 // pred_fallthru
          _
        // Predicated region
        $region21: #{single_layer_decoder_forward.1} parent=11 // pred_check
          %p267 = pneg %p120
        $region22: #{single_layer_decoder_forward.1} parent=11 // pred_check_branch
          %269 = sbr.rel (%p267) target = $region24
        $region23: #{single_layer_decoder_forward.1} parent=11 // pred_region
          _
        $region24: #{single_layer_decoder_forward.1} parent=11 // pred_fallthru
          _
        // Predicated region
        $region25: #{single_layer_decoder_forward.1} parent=11 // pred_check
          %p270 = pneg %p141
        $region26: #{single_layer_decoder_forward.1} parent=11 // pred_check_branch
          %272 = sbr.rel (%p270) target = $region28
        $region27: #{single_layer_decoder_forward.1} parent=11 // pred_region
          _
        $region28: #{single_layer_decoder_forward.1} parent=11 // pred_fallthru
          _
        // Predicated region
        $region29: #{single_layer_decoder_forward.1} parent=11 // pred_check
          %p273 = pneg %p162
        $region30: #{single_layer_decoder_forward.1} parent=11 // pred_check_branch
          %275 = sbr.rel (%p273) target = $region32
        $region31: #{single_layer_decoder_forward.1} parent=11 // pred_region
          _
        $region32: #{single_layer_decoder_forward.1} parent=11 // pred_fallthru
          _
      $region12: #{single_layer_decoder_forward.1} parent=5 // pred_fallthru
        _
      %p276 = scmp.lt.s32.totalorder %s19, 2
      // Predicated region
      $region33: #{single_layer_decoder_forward.1} parent=5 // pred_check
        %p277 = pneg %p276
      $region34: #{single_layer_decoder_forward.1} parent=5 // pred_check_branch
        %279 = sbr.rel (%p277) target = $region36
      $region35: #{single_layer_decoder_forward.1} parent=5 // pred_region
        // Predicated region
        $region37: #{single_layer_decoder_forward.1} parent=35 // pred_check
          %p280 = pneg %p51
        $region38: #{single_layer_decoder_forward.1} parent=35 // pred_check_branch
          %282 = sbr.rel (%p280) target = $region40
        $region39: #{single_layer_decoder_forward.1} parent=35 // pred_region
          %p283 = scmp.lt.s32.totalorder %s26, 1
          %s284 = scalar_select %p283, %s26, 1
          %s285 = smul.addr %s284, 8
          %s286 = scalar_lea.vmem %s0, %s285
        $region40: #{single_layer_decoder_forward.1} parent=35 // pred_fallthru
          _
      $region36: #{single_layer_decoder_forward.1} parent=5 // pred_fallthru
        _
      %p287 = scmp.le.s32.totalorder 1, %s19
      %p288 = scmp.lt.s32.totalorder %s19, 3
      %p289 = pnand %p287, %p288
      %p290 = pneg %p289
      // Predicated region
      $region41: #{single_layer_decoder_forward.1} parent=5 // pred_check
        _
      $region42: #{single_layer_decoder_forward.1} parent=5 // pred_check_branch
        %292 = sbr.rel (%p289) target = $region44
      $region43: #{single_layer_decoder_forward.1} parent=5 // pred_region
        %s293 = ssub.s32 %s19, 1
        %p294 = scmp.lt.s32.totalorder %s28, 1
        %s295 = scalar_select %p294, %s28, 1
        %s296 = smul.addr %s295, 8
        %s297 = scalar_lea.vmem %s0, %s296
        %p298 = pneg %p57
        %p299 = pneg %p54
        %p300 = pneg %p78
        %p301 = pneg %p75
        %p302 = pneg %p99
        %p303 = pneg %p96
        %p304 = pneg %p120
        %p305 = pneg %p117
        %p306 = pneg %p141
        %p307 = pneg %p138
        %p308 = pneg %p162
        %p309 = pneg %p159
        %p310 = pneg %p190
        %p311 = pneg %p187
        %s312 = sand.u32 %s177, 1
        %s313 = scalar_lea.sflag [#allocation6], %s312
        %s314 = sand.u32 %s177, 1
        %s315 = smul.addr %s314, 8
        %s316 = scalar_lea.vmem [#allocation5], %s315
        %p317 = pneg %p218
        %p318 = pneg %p215
        %p319 = scmp.lt.s32.totalorder %s28, 1
        %s320 = scalar_select %p319, %s28, 1
        %p321 = scmp.lt.s32.totalorder %s29, 0
        %s322 = scalar_select %p321, %s29, 0
        %s323 = sadd.s32 %s322, %s320
        %s324 = smul.addr %s323, 8
        %s325 = scalar_lea.vmem %s7, %s324
        %p326 = pneg %p246
        %p327 = pneg %p243
        %p328 = scmp.lt.s32.totalorder %s28, 1
        %s329 = scalar_select %p328, %s28, 1
        %p330 = scmp.lt.s32.totalorder %s29, 0
        %s331 = scalar_select %p330, %s29, 0
        %s332 = sadd.s32 %s331, %s329
        %s333 = smul.addr %s332, 8
        %s334 = scalar_lea.vmem %s8, %s333
        %p335 = scmp.lt.s32.totalorder %s28, 1
        %s336 = scalar_select %p335, %s28, 1
        %s337 = smul.addr %s336, 8
        %s338 = scalar_lea.vmem %s0, %s337
        %p339 = scmp.lt.s32.totalorder %s28, 1
        %s340 = scalar_select %p339, %s28, 1
        %p341 = scmp.lt.s32.totalorder %s29, 0
        %s342 = scalar_select %p341, %s29, 0
        %s343 = sadd.s32 %s342, %s340
        %s344 = smul.addr %s343, 8
        %s345 = scalar_lea.vmem %s7, %s344
        %p346 = scmp.lt.s32.totalorder %s28, 1
        %s347 = scalar_select %p346, %s28, 1
        %p348 = scmp.lt.s32.totalorder %s29, 0
        %s349 = scalar_select %p348, %s29, 0
        %s350 = sadd.s32 %s349, %s347
        %s351 = smul.addr %s350, 8
        %s352 = scalar_lea.vmem %s8, %s351
        %p353 = scmp.eq.s32.totalorder %s29, 0
        // Predicated region
        $region45: #{single_layer_decoder_forward.1} parent=43 // pred_check
          %p354 = pneg %p353
        $region46: #{single_layer_decoder_forward.1} parent=43 // pred_check_branch
          %356 = sbr.rel (%p354) target = $region48
        $region47: #{single_layer_decoder_forward.1} parent=43 // pred_region
          %v357 = vld [vmem:[%s1] sm:$0xf]
          %v358 = vld [vmem:[%s3] sm:$0xf]
          %v359 = vld [vmem:[%s2] sm:$0x1]
          %v360 = vld [vmem:[%s338] sm:$0xff]
          %v362 = vlaneseq
          %v363 = vshrl.u32 %v362, 7
          %v364 = vsub.s32 0, %v363
          %v365 = vrot.slane %v359, %v364
          %vm367 = vcmask 31744
          %v369 = vsel %vm367, %v360, 0
          %vm371 = vcmask 1043456
          %v373 = vsel %vm371, %v357, 0
          %375 = vmatprep.subr.mxu0 0.0
          %376 = vmatpush1.msra.mxu0 0.0
          %377 = vmatprep.subr.mxu0 0.0
          %378 = vmatpush1.msra.mxu0 0.0
          %379 = vmatprep.subr.mxu0 0.0
          %380 = vmatpush1.msra.mxu0 0.0
          %381 = vmatprep.subr.mxu0 0.0
          %382 = vmatpush1.msra.mxu0 0.0
          %383 = vmatprep.subr.mxu0 0.0
          %384 = vmatpush1.msra.mxu0 0.0
          %385 = vmatprep.subr.mxu0 0.0
          %386 = vmatpush1.msra.mxu0 0.0
          %387 = vmatprep.subr.mxu0 0.0
          %388 = vmatpush1.msra.mxu0 0.0
          %389 = vmatprep.subr.mxu0 0.0
          %390 = vmatpush1.msra.mxu0 0.0
          %391 = vmatprep.subr.mxu0 0.0
          %392 = vmatpush1.msra.mxu0 0.0
          %393 = vmatprep.subr.mxu0 0.0
          %394 = vmatpush1.msra.mxu0 0.0
          %395 = vmatprep.subr.mxu0 0.0
          %396 = vmatpush1.msra.mxu0 0.0
          %397 = vmatprep.subr.mxu0 0.0
          %398 = vmatpush1.msra.mxu0 0.0
          %399 = vmatprep.subr.mxu0 0.0
          %400 = vmatpush1.msra.mxu0 0.0
          %401 = vmatprep.subr.mxu0 0.0
          %402 = vmatpush1.msra.mxu0 0.0
          %403 = vmatprep.subr.mxu0 0.0
          %404 = vmatpush1.msra.mxu0 0.0
          %405 = vmatprep.subr.mxu0 0.0
          %406 = vmatpush1.msra.mxu0 %v373
          %407 = vmatprep.subr.mxu0 0.0
          %408 = vmatpush2.msra.mxu0 0.0
          %409 = vmatprep.subr.mxu0 0.0
          %410 = vmatpush2.msra.mxu0 0.0
          %411 = vmatprep.subr.mxu0 0.0
          %412 = vmatpush2.msra.mxu0 0.0
          %413 = vmatprep.subr.mxu0 0.0
          %414 = vmatpush2.msra.mxu0 0.0
          %415 = vmatprep.subr.mxu0 0.0
          %416 = vmatpush2.msra.mxu0 0.0
          %417 = vmatprep.subr.mxu0 0.0
          %418 = vmatpush2.msra.mxu0 0.0
          %419 = vmatprep.subr.mxu0 0.0
          %420 = vmatpush2.msra.mxu0 0.0
          %421 = vmatprep.subr.mxu0 0.0
          %422 = vmatpush2.msra.mxu0 0.0
          %423 = vmatprep.subr.mxu0 0.0
          %424 = vmatpush2.msra.mxu0 0.0
          %425 = vmatprep.subr.mxu0 0.0
          %426 = vmatpush2.msra.mxu0 0.0
          %427 = vmatprep.subr.mxu0 0.0
          %428 = vmatpush2.msra.mxu0 0.0
          %429 = vmatprep.subr.mxu0 0.0
          %430 = vmatpush2.msra.mxu0 0.0
          %431 = vmatprep.subr.mxu0 0.0
          %432 = vmatpush2.msra.mxu0 0.0
          %433 = vmatprep.subr.mxu0 0.0
          %434 = vmatpush2.msra.mxu0 0.0
          %435 = vmatprep.subr.mxu0 0.0
          %436 = vmatpush2.msra.mxu0 0.0
          %437 = vmatprep.subr.mxu0 0.0
          %438 = vmatpush2.msra.mxu0 0.0
          %439 = vmatprep.mubr.f32.mxu0 0.0
          %440 = vmatmul.mubr.f32.gmra.mxu0 %v369
          %v441 = vpop.f32.mrf.mxu0
          %v442 = vadd.f32 %v365, %v441
          %v443 = vpop.f32.mrf.mxu0
          %444 = vdwg.mxu0
          %vm445 = vcmask 261120
          %446 = vst.msk [vmem:[#allocation2] sm:$0xff] %vm445, %v442
          %v448 = vsel %vm371, %v358, 0
          %450 = vmatprep.subr.mxu0 0.0
          %451 = vmatpush1.msra.mxu0 0.0
          %452 = vmatprep.subr.mxu0 0.0
          %453 = vmatpush1.msra.mxu0 0.0
          %454 = vmatprep.subr.mxu0 0.0
          %455 = vmatpush1.msra.mxu0 0.0
          %456 = vmatprep.subr.mxu0 0.0
          %457 = vmatpush1.msra.mxu0 0.0
          %458 = vmatprep.subr.mxu0 0.0
          %459 = vmatpush1.msra.mxu0 0.0
          %460 = vmatprep.subr.mxu0 0.0
          %461 = vmatpush1.msra.mxu0 0.0
          %462 = vmatprep.subr.mxu0 0.0
          %463 = vmatpush1.msra.mxu0 0.0
          %464 = vmatprep.subr.mxu0 0.0
          %465 = vmatpush1.msra.mxu0 0.0
          %466 = vmatprep.subr.mxu0 0.0
          %467 = vmatpush1.msra.mxu0 0.0
          %468 = vmatprep.subr.mxu0 0.0
          %469 = vmatpush1.msra.mxu0 0.0
          %470 = vmatprep.subr.mxu0 0.0
          %471 = vmatpush1.msra.mxu0 0.0
          %472 = vmatprep.subr.mxu0 0.0
          %473 = vmatpush1.msra.mxu0 0.0
          %474 = vmatprep.subr.mxu0 0.0
          %475 = vmatpush1.msra.mxu0 0.0
          %476 = vmatprep.subr.mxu0 0.0
          %477 = vmatpush1.msra.mxu0 0.0
          %478 = vmatprep.subr.mxu0 0.0
          %479 = vmatpush1.msra.mxu0 0.0
          %480 = vmatprep.subr.mxu0 0.0
          %481 = vmatpush1.msra.mxu0 %v448
          %482 = vmatprep.subr.mxu0 0.0
          %483 = vmatpush2.msra.mxu0 0.0
          %484 = vmatprep.subr.mxu0 0.0
          %485 = vmatpush2.msra.mxu0 0.0
          %486 = vmatprep.subr.mxu0 0.0
          %487 = vmatpush2.msra.mxu0 0.0
          %488 = vmatprep.subr.mxu0 0.0
          %489 = vmatpush2.msra.mxu0 0.0
          %490 = vmatprep.subr.mxu0 0.0
          %491 = vmatpush2.msra.mxu0 0.0
          %492 = vmatprep.subr.mxu0 0.0
          %493 = vmatpush2.msra.mxu0 0.0
          %494 = vmatprep.subr.mxu0 0.0
          %495 = vmatpush2.msra.mxu0 0.0
          %496 = vmatprep.subr.mxu0 0.0
          %497 = vmatpush2.msra.mxu0 0.0
          %498 = vmatprep.subr.mxu0 0.0
          %499 = vmatpush2.msra.mxu0 0.0
          %500 = vmatprep.subr.mxu0 0.0
          %501 = vmatpush2.msra.mxu0 0.0
          %502 = vmatprep.subr.mxu0 0.0
          %503 = vmatpush2.msra.mxu0 0.0
          %504 = vmatprep.subr.mxu0 0.0
          %505 = vmatpush2.msra.mxu0 0.0
          %506 = vmatprep.subr.mxu0 0.0
          %507 = vmatpush2.msra.mxu0 0.0
          %508 = vmatprep.subr.mxu0 0.0
          %509 = vmatpush2.msra.mxu0 0.0
          %510 = vmatprep.subr.mxu0 0.0
          %511 = vmatpush2.msra.mxu0 0.0
          %512 = vmatprep.subr.mxu0 0.0
          %513 = vmatpush2.msra.mxu0 0.0
          %514 = vmatprep.mubr.f32.mxu0 0.0
          %515 = vmatmul.mubr.f32.gmra.mxu0 %v369
          %v516 = vpop.f32.mrf.mxu0
          %v517 = vadd.f32 0.0, %v516
          %v518 = vpop.f32.mrf.mxu0
          %519 = vdwg.mxu0
          %520 = vxpose.xlu0.b32.start [1/16] %v517, 128
          %521 = vxpose.xlu0.b32.cont [2/16] 0.0, 128
          %522 = vxpose.xlu0.b32.cont [3/16] 0.0, 128
          %523 = vxpose.xlu0.b32.cont [4/16] 0.0, 128
          %524 = vxpose.xlu0.b32.cont [5/16] 0.0, 128
          %525 = vxpose.xlu0.b32.cont [6/16] 0.0, 128
          %526 = vxpose.xlu0.b32.cont [7/16] 0.0, 128
          %527 = vxpose.xlu0.b32.cont [8/16] 0.0, 128
          %528 = vxpose.xlu0.b32.cont [9/16] 0.0, 128
          %529 = vxpose.xlu0.b32.cont [10/16] 0.0, 128
          %530 = vxpose.xlu0.b32.cont [11/16] 0.0, 128
          %531 = vxpose.xlu0.b32.cont [12/16] 0.0, 128
          %532 = vxpose.xlu0.b32.cont [13/16] 0.0, 128
          %533 = vxpose.xlu0.b32.cont [14/16] 0.0, 128
          %534 = vxpose.xlu0.b32.cont [15/16] 0.0, 128
          %535 = vxpose.xlu0.b32.end [16/16] 0.0, 128
          %v536 = vpop.trf.xlu0
          %v537 = vpop.trf.xlu0
          %v538 = vpop.trf.xlu0
          %v539 = vpop.trf.xlu0
          %v540 = vpop.trf.xlu0
          %v541 = vpop.trf.xlu0
          %v542 = vpop.trf.xlu0
          %v543 = vpop.trf.xlu0
          %v544 = vpop.trf.xlu0
          %v545 = vpop.trf.xlu0
          %v546 = vpop.trf.xlu0
          %v547 = vpop.trf.xlu0
          %v548 = vpop.trf.xlu0
          %v549 = vpop.trf.xlu0
          %v550 = vpop.trf.xlu0
          %v551 = vpop.trf.xlu0
          %vm552 = vcmask 64512
          %553 = vst.msk [vmem:[#allocation3] sm:$0xff] %vm552, %v536
          %554 = vst.msk [vmem:[#allocation3 + $0x8] sm:$0xff] %vm552, %v537
          %555 = vst.msk [vmem:[#allocation3 + $0x10] sm:$0xff] %vm552, %v538
          %556 = vst.msk [vmem:[#allocation3 + $0x18] sm:$0xff] %vm552, %v539
        $region48: #{single_layer_decoder_forward.1} parent=43 // pred_fallthru
          _
        %v557 = vld [vmem:[%s4] sm:$0xff]
        %v558 = vld [vmem:[%s4 + $0x8] sm:$0xff]
        %v559 = vld [vmem:[%s4 + $0x10] sm:$0xff]
        %v560 = vld [vmem:[%s4 + $0x18] sm:$0xff]
        %s561 = sld [smem:[#allocation4]]
        %s562 = smul.u32 %s29, 8
        %v563 = vlaneseq
        %v564 = vshrl.u32 %v563, 7
        %v565 = vstv %s562
        %v566 = vadd.s32 %v564, %v565
        %v567 = vlaneseq
        %v568 = vand.u32 %v567, 127
        %vm569 = vcmp.ne.s32.totalorder %v566, %v568
        %v570 = vsel %vm569, 1, 0
        %v571 = vcvt.s32.f32 %v570
        %s572 = scalar_lea.vmem [#allocation2], %s562
        %v573 = vld [vmem:[%s572] sm:$0xff]
        %v574 = vld [vmem:[#allocation3] sm:$0xff]
        %v575 = vld [vmem:[#allocation3 + $0x8] sm:$0xff]
        %v576 = vld [vmem:[#allocation3 + $0x10] sm:$0xff]
        %v577 = vld [vmem:[#allocation3 + $0x18] sm:$0xff]
        %v578 = vlaneseq
        %v579 = vshrl.u32 %v578, 7
        %v580 = vsub.s32 0, %v579
        %v581 = vrot.slane %v573, %v580
        %583 = vbcast.lane.b32.xlu0 %v581, 256
        %v584 = vpop.permute.xlu0 %583
        %s586 = sor.u32 256, 8
        %587 = vbcast.lane.b32.xlu0 %v581, %s586
        %v588 = vpop.permute.xlu0 %587
        %s590 = sor.u32 256, 16
        %591 = vbcast.lane.b32.xlu0 %v581, %s590
        %v592 = vpop.permute.xlu0 %591
        %s594 = sor.u32 256, 24
        %595 = vbcast.lane.b32.xlu0 %v581, %s594
        %v596 = vpop.permute.xlu0 %595
        %v597 = vlaneseq
        %v598 = vshrl.u32 %v597, 7
        %v599 = vsub.s32 1, %v598
        %v600 = vrot.slane %v573, %v599
        %602 = vbcast.lane.b32.xlu0 %v600, 256
        %v603 = vpop.permute.xlu0 %602
        %s605 = sor.u32 256, 8
        %606 = vbcast.lane.b32.xlu0 %v600, %s605
        %v607 = vpop.permute.xlu0 %606
        %s609 = sor.u32 256, 16
        %610 = vbcast.lane.b32.xlu0 %v600, %s609
        %v611 = vpop.permute.xlu0 %610
        %s613 = sor.u32 256, 24
        %614 = vbcast.lane.b32.xlu0 %v600, %s613
        %v615 = vpop.permute.xlu0 %614
        %v616 = vlaneseq
        %v617 = vshrl.u32 %v616, 7
        %v618 = vsub.s32 2, %v617
        %v619 = vrot.slane %v573, %v618
        %621 = vbcast.lane.b32.xlu0 %v619, 256
        %v622 = vpop.permute.xlu0 %621
        %s624 = sor.u32 256, 8
        %625 = vbcast.lane.b32.xlu0 %v619, %s624
        %v626 = vpop.permute.xlu0 %625
        %s628 = sor.u32 256, 16
        %629 = vbcast.lane.b32.xlu0 %v619, %s628
        %v630 = vpop.permute.xlu0 %629
        %s632 = sor.u32 256, 24
        %633 = vbcast.lane.b32.xlu0 %v619, %s632
        %v634 = vpop.permute.xlu0 %633
        %v635 = vlaneseq
        %v636 = vshrl.u32 %v635, 7
        %v637 = vsub.s32 3, %v636
        %v638 = vrot.slane %v573, %v637
        %640 = vbcast.lane.b32.xlu0 %v638, 256
        %v641 = vpop.permute.xlu0 %640
        %s643 = sor.u32 256, 8
        %644 = vbcast.lane.b32.xlu0 %v638, %s643
        %v645 = vpop.permute.xlu0 %644
        %s647 = sor.u32 256, 16
        %648 = vbcast.lane.b32.xlu0 %v638, %s647
        %v649 = vpop.permute.xlu0 %648
        %s651 = sor.u32 256, 24
        %652 = vbcast.lane.b32.xlu0 %v638, %s651
        %v653 = vpop.permute.xlu0 %652
        %v654 = vlaneseq
        %v655 = vshrl.u32 %v654, 7
        %v656 = vsub.s32 4, %v655
        %v657 = vrot.slane %v573, %v656
        %659 = vbcast.lane.b32.xlu0 %v657, 256
        %v660 = vpop.permute.xlu0 %659
        %s662 = sor.u32 256, 8
        %663 = vbcast.lane.b32.xlu0 %v657, %s662
        %v664 = vpop.permute.xlu0 %663
        %s666 = sor.u32 256, 16
        %667 = vbcast.lane.b32.xlu0 %v657, %s666
        %v668 = vpop.permute.xlu0 %667
        %s670 = sor.u32 256, 24
        %671 = vbcast.lane.b32.xlu0 %v657, %s670
        %v672 = vpop.permute.xlu0 %671
        %v673 = vlaneseq
        %v674 = vshrl.u32 %v673, 7
        %v675 = vsub.s32 5, %v674
        %v676 = vrot.slane %v573, %v675
        %678 = vbcast.lane.b32.xlu0 %v676, 256
        %v679 = vpop.permute.xlu0 %678
        %s681 = sor.u32 256, 8
        %682 = vbcast.lane.b32.xlu0 %v676, %s681
        %v683 = vpop.permute.xlu0 %682
        %s685 = sor.u32 256, 16
        %686 = vbcast.lane.b32.xlu0 %v676, %s685
        %v687 = vpop.permute.xlu0 %686
        %s689 = sor.u32 256, 24
        %690 = vbcast.lane.b32.xlu0 %v676, %s689
        %v691 = vpop.permute.xlu0 %690
        %v692 = vlaneseq
        %v693 = vshrl.u32 %v692, 7
        %v694 = vsub.s32 6, %v693
        %v695 = vrot.slane %v573, %v694
        %697 = vbcast.lane.b32.xlu0 %v695, 256
        %v698 = vpop.permute.xlu0 %697
        %s700 = sor.u32 256, 8
        %701 = vbcast.lane.b32.xlu0 %v695, %s700
        %v702 = vpop.permute.xlu0 %701
        %s704 = sor.u32 256, 16
        %705 = vbcast.lane.b32.xlu0 %v695, %s704
        %v706 = vpop.permute.xlu0 %705
        %s708 = sor.u32 256, 24
        %709 = vbcast.lane.b32.xlu0 %v695, %s708
        %v710 = vpop.permute.xlu0 %709
        %v711 = vlaneseq
        %v712 = vshrl.u32 %v711, 7
        %v713 = vsub.s32 7, %v712
        %v714 = vrot.slane %v573, %v713
        %716 = vbcast.lane.b32.xlu0 %v714, 256
        %v717 = vpop.permute.xlu0 %716
        %s719 = sor.u32 256, 8
        %720 = vbcast.lane.b32.xlu0 %v714, %s719
        %v721 = vpop.permute.xlu0 %720
        %s723 = sor.u32 256, 16
        %724 = vbcast.lane.b32.xlu0 %v714, %s723
        %v725 = vpop.permute.xlu0 %724
        %s727 = sor.u32 256, 24
        %728 = vbcast.lane.b32.xlu0 %v714, %s727
        %v729 = vpop.permute.xlu0 %728
        %v730 = vadd.f32 %v584, %v574
        %v731 = vadd.f32 %v588, %v575
        %v732 = vadd.f32 %v592, %v576
        %v733 = vadd.f32 %v596, %v577
        %v734 = vadd.f32 %v603, %v574
        %v735 = vadd.f32 %v607, %v575
        %v736 = vadd.f32 %v611, %v576
        %v737 = vadd.f32 %v615, %v577
        %v738 = vadd.f32 %v622, %v574
        %v739 = vadd.f32 %v626, %v575
        %v740 = vadd.f32 %v630, %v576
        %v741 = vadd.f32 %v634, %v577
        %v742 = vadd.f32 %v641, %v574
        %v743 = vadd.f32 %v645, %v575
        %v744 = vadd.f32 %v649, %v576
        %v745 = vadd.f32 %v653, %v577
        %v746 = vadd.f32 %v660, %v574
        %v747 = vadd.f32 %v664, %v575
        %v748 = vadd.f32 %v668, %v576
        %v749 = vadd.f32 %v672, %v577
        %v750 = vadd.f32 %v679, %v574
        %v751 = vadd.f32 %v683, %v575
        %v752 = vadd.f32 %v687, %v576
        %v753 = vadd.f32 %v691, %v577
        %v754 = vadd.f32 %v698, %v574
        %v755 = vadd.f32 %v702, %v575
        %v756 = vadd.f32 %v706, %v576
        %v757 = vadd.f32 %v710, %v577
        %v758 = vadd.f32 %v717, %v574
        %v759 = vadd.f32 %v721, %v575
        %v760 = vadd.f32 %v725, %v576
        %v761 = vadd.f32 %v729, %v577
        %v762 = vmax.f32 %v730, 0.0
        %v763 = vmax.f32 %v731, 0.0
        %v764 = vmax.f32 %v732, 0.0
        %v765 = vmax.f32 %v733, 0.0
        %v766 = vmax.f32 %v734, 0.0
        %v767 = vmax.f32 %v735, 0.0
        %v768 = vmax.f32 %v736, 0.0
        %v769 = vmax.f32 %v737, 0.0
        %v770 = vmax.f32 %v738, 0.0
        %v771 = vmax.f32 %v739, 0.0
        %v772 = vmax.f32 %v740, 0.0
        %v773 = vmax.f32 %v741, 0.0
        %v774 = vmax.f32 %v742, 0.0
        %v775 = vmax.f32 %v743, 0.0
        %v776 = vmax.f32 %v744, 0.0
        %v777 = vmax.f32 %v745, 0.0
        %v778 = vmax.f32 %v746, 0.0
        %v779 = vmax.f32 %v747, 0.0
        %v780 = vmax.f32 %v748, 0.0
        %v781 = vmax.f32 %v749, 0.0
        %v782 = vmax.f32 %v750, 0.0
        %v783 = vmax.f32 %v751, 0.0
        %v784 = vmax.f32 %v752, 0.0
        %v785 = vmax.f32 %v753, 0.0
        %v786 = vmax.f32 %v754, 0.0
        %v787 = vmax.f32 %v755, 0.0
        %v788 = vmax.f32 %v756, 0.0
        %v789 = vmax.f32 %v757, 0.0
        %v790 = vmax.f32 %v758, 0.0
        %v791 = vmax.f32 %v759, 0.0
        %v792 = vmax.f32 %v760, 0.0
        %v793 = vmax.f32 %v761, 0.0
        %795 = vset.pattern.permute.xlu0 0
        %796 = vperm.xlu0 %795, %v557
        %v797 = vpop.permute.xlu0 %796
        %800 = vset.pattern.permute.xlu0 0
        %801 = vperm.xlu0 %800, %v558
        %v802 = vpop.permute.xlu0 %801
        %805 = vset.pattern.permute.xlu0 0
        %806 = vperm.xlu0 %805, %v559
        %v807 = vpop.permute.xlu0 %806
        %810 = vset.pattern.permute.xlu0 0
        %811 = vperm.xlu0 %810, %v560
        %v812 = vpop.permute.xlu0 %811
        %v814 = vmul.f32 %v762, %v797
        %v815 = vmul.f32 %v763, %v802
        %v816 = vmul.f32 %v764, %v807
        %v817 = vmul.f32 %v765, %v812
        %v818 = vmul.f32 %v766, %v797
        %v819 = vmul.f32 %v767, %v802
        %v820 = vmul.f32 %v768, %v807
        %v821 = vmul.f32 %v769, %v812
        %v822 = vmul.f32 %v770, %v797
        %v823 = vmul.f32 %v771, %v802
        %v824 = vmul.f32 %v772, %v807
        %v825 = vmul.f32 %v773, %v812
        %v826 = vmul.f32 %v774, %v797
        %v827 = vmul.f32 %v775, %v802
        %v828 = vmul.f32 %v776, %v807
        %v829 = vmul.f32 %v777, %v812
        %v830 = vmul.f32 %v778, %v797
        %v831 = vmul.f32 %v779, %v802
        %v832 = vmul.f32 %v780, %v807
        %v833 = vmul.f32 %v781, %v812
        %v834 = vmul.f32 %v782, %v797
        %v835 = vmul.f32 %v783, %v802
        %v836 = vmul.f32 %v784, %v807
        %v837 = vmul.f32 %v785, %v812
        %v838 = vmul.f32 %v786, %v797
        %v839 = vmul.f32 %v787, %v802
        %v840 = vmul.f32 %v788, %v807
        %v841 = vmul.f32 %v789, %v812
        %v842 = vmul.f32 %v790, %v797
        %v843 = vmul.f32 %v791, %v802
        %v844 = vmul.f32 %v792, %v807
        %v845 = vmul.f32 %v793, %v812
        %vm846 = vcmask 64512
        %v847 = vsel %vm846, %v814, 0.0
        %v848 = vsel %vm846, %v815, 0.0
        %v849 = vadd.f32 %v847, %v848
        %v850 = vsel %vm846, %v816, 0.0
        %v851 = vadd.f32 %v849, %v850
        %v852 = vsel %vm846, %v817, 0.0
        %v853 = vadd.f32 %v851, %v852
        %v854 = vrot.slane %v853, 4
        %v855 = vadd.f32 %v853, %v854
        %v856 = vrot.slane %v855, 2
        %v857 = vadd.f32 %v855, %v856
        %v858 = vrot.slane %v857, 1
        %v859 = vadd.f32 %v857, %v858
        %v860 = vsel %vm846, %v818, 0.0
        %v861 = vsel %vm846, %v819, 0.0
        %v862 = vadd.f32 %v860, %v861
        %v863 = vsel %vm846, %v820, 0.0
        %v864 = vadd.f32 %v862, %v863
        %v865 = vsel %vm846, %v821, 0.0
        %v866 = vadd.f32 %v864, %v865
        %v867 = vrot.slane %v866, 4
        %v868 = vadd.f32 %v866, %v867
        %v869 = vrot.slane %v868, 2
        %v870 = vadd.f32 %v868, %v869
        %v871 = vrot.slane %v870, 1
        %v872 = vadd.f32 %v870, %v871
        %v873 = vsel %vm846, %v822, 0.0
        %v874 = vsel %vm846, %v823, 0.0
        %v875 = vadd.f32 %v873, %v874
        %v876 = vsel %vm846, %v824, 0.0
        %v877 = vadd.f32 %v875, %v876
        %v878 = vsel %vm846, %v825, 0.0
        %v879 = vadd.f32 %v877, %v878
        %v880 = vrot.slane %v879, 4
        %v881 = vadd.f32 %v879, %v880
        %v882 = vrot.slane %v881, 2
        %v883 = vadd.f32 %v881, %v882
        %v884 = vrot.slane %v883, 1
        %v885 = vadd.f32 %v883, %v884
        %v886 = vsel %vm846, %v826, 0.0
        %v887 = vsel %vm846, %v827, 0.0
        %v888 = vadd.f32 %v886, %v887
        %v889 = vsel %vm846, %v828, 0.0
        %v890 = vadd.f32 %v888, %v889
        %v891 = vsel %vm846, %v829, 0.0
        %v892 = vadd.f32 %v890, %v891
        %v893 = vrot.slane %v892, 4
        %v894 = vadd.f32 %v892, %v893
        %v895 = vrot.slane %v894, 2
        %v896 = vadd.f32 %v894, %v895
        %v897 = vrot.slane %v896, 1
        %v898 = vadd.f32 %v896, %v897
        %v899 = vsel %vm846, %v830, 0.0
        %v900 = vsel %vm846, %v831, 0.0
        %v901 = vadd.f32 %v899, %v900
        %v902 = vsel %vm846, %v832, 0.0
        %v903 = vadd.f32 %v901, %v902
        %v904 = vsel %vm846, %v833, 0.0
        %v905 = vadd.f32 %v903, %v904
        %v906 = vrot.slane %v905, 4
        %v907 = vadd.f32 %v905, %v906
        %v908 = vrot.slane %v907, 2
        %v909 = vadd.f32 %v907, %v908
        %v910 = vrot.slane %v909, 1
        %v911 = vadd.f32 %v909, %v910
        %v912 = vsel %vm846, %v834, 0.0
        %v913 = vsel %vm846, %v835, 0.0
        %v914 = vadd.f32 %v912, %v913
        %v915 = vsel %vm846, %v836, 0.0
        %v916 = vadd.f32 %v914, %v915
        %v917 = vsel %vm846, %v837, 0.0
        %v918 = vadd.f32 %v916, %v917
        %v919 = vrot.slane %v918, 4
        %v920 = vadd.f32 %v918, %v919
        %v921 = vrot.slane %v920, 2
        %v922 = vadd.f32 %v920, %v921
        %v923 = vrot.slane %v922, 1
        %v924 = vadd.f32 %v922, %v923
        %v925 = vsel %vm846, %v838, 0.0
        %v926 = vsel %vm846, %v839, 0.0
        %v927 = vadd.f32 %v925, %v926
        %v928 = vsel %vm846, %v840, 0.0
        %v929 = vadd.f32 %v927, %v928
        %v930 = vsel %vm846, %v841, 0.0
        %v931 = vadd.f32 %v929, %v930
        %v932 = vrot.slane %v931, 4
        %v933 = vadd.f32 %v931, %v932
        %v934 = vrot.slane %v933, 2
        %v935 = vadd.f32 %v933, %v934
        %v936 = vrot.slane %v935, 1
        %v937 = vadd.f32 %v935, %v936
        %v938 = vsel %vm846, %v842, 0.0
        %v939 = vsel %vm846, %v843, 0.0
        %v940 = vadd.f32 %v938, %v939
        %v941 = vsel %vm846, %v844, 0.0
        %v942 = vadd.f32 %v940, %v941
        %v943 = vsel %vm846, %v845, 0.0
        %v944 = vadd.f32 %v942, %v943
        %v945 = vrot.slane %v944, 4
        %v946 = vadd.f32 %v944, %v945
        %v947 = vrot.slane %v946, 2
        %v948 = vadd.f32 %v946, %v947
        %v949 = vrot.slane %v948, 1
        %v950 = vadd.f32 %v948, %v949
        %v951 = vstv %s561
        %v952 = vadd.f32 %v859, %v951
        %v953 = vadd.f32 %v872, %v951
        %v954 = vadd.f32 %v885, %v951
        %v955 = vadd.f32 %v898, %v951
        %v956 = vadd.f32 %v911, %v951
        %v957 = vadd.f32 %v924, %v951
        %v958 = vadd.f32 %v937, %v951
        %v959 = vadd.f32 %v950, %v951
        %v960 = vxor.u32 %v952, 2147483648
        %v961 = vxor.u32 %v953, 2147483648
        %v962 = vxor.u32 %v954, 2147483648
        %v963 = vxor.u32 %v955, 2147483648
        %v964 = vxor.u32 %v956, 2147483648
        %v965 = vxor.u32 %v957, 2147483648
        %v966 = vxor.u32 %v958, 2147483648
        %v967 = vxor.u32 %v959, 2147483648
        %v968 = vmul.f32 %v960, 1.442695
        %v969 = vpow.pop %v968
        %v970 = vmul.f32 %v961, 1.442695
        %v971 = vpow.pop %v970
        %v972 = vmul.f32 %v962, 1.442695
        %v973 = vpow.pop %v972
        %v974 = vmul.f32 %v963, 1.442695
        %v975 = vpow.pop %v974
        %v976 = vmul.f32 %v964, 1.442695
        %v977 = vpow.pop %v976
        %v978 = vmul.f32 %v965, 1.442695
        %v979 = vpow.pop %v978
        %v980 = vmul.f32 %v966, 1.442695
        %v981 = vpow.pop %v980
        %v982 = vmul.f32 %v967, 1.442695
        %v983 = vpow.pop %v982
        %v984 = vadd.f32 %v969, 1.0
        %v985 = vadd.f32 %v971, 1.0
        %v986 = vadd.f32 %v973, 1.0
        %v987 = vadd.f32 %v975, 1.0
        %v988 = vadd.f32 %v977, 1.0
        %v989 = vadd.f32 %v979, 1.0
        %v990 = vadd.f32 %v981, 1.0
        %v991 = vadd.f32 %v983, 1.0
        %v992 = vrcp.pop %v984
        %v993 = vmul.f32 1.0, %v992
        %v994 = vrcp.pop %v985
        %v995 = vmul.f32 1.0, %v994
        %v996 = vrcp.pop %v986
        %v997 = vmul.f32 1.0, %v996
        %v998 = vrcp.pop %v987
        %v999 = vmul.f32 1.0, %v998
        %v1000 = vrcp.pop %v988
        %v1001 = vmul.f32 1.0, %v1000
        %v1002 = vrcp.pop %v989
        %v1003 = vmul.f32 1.0, %v1002
        %v1004 = vrcp.pop %v990
        %v1005 = vmul.f32 1.0, %v1004
        %v1006 = vrcp.pop %v991
        %v1007 = vmul.f32 1.0, %v1006
        %v1009 = vrot.slane %v571, 1
        %v1010 = vrot.slane %v571, 2
        %v1011 = vrot.slane %v571, 3
        %v1012 = vrot.slane %v571, 4
        %v1013 = vrot.slane %v571, 5
        %v1014 = vrot.slane %v571, 6
        %v1015 = vrot.slane %v571, 7
        %v1024 = vmul.f32 %v993, %v571
        %v1025 = vmul.f32 %v995, %v1009
        %v1026 = vmul.f32 %v997, %v1010
        %v1027 = vmul.f32 %v999, %v1011
        %v1028 = vmul.f32 %v1001, %v1012
        %v1029 = vmul.f32 %v1003, %v1013
        %v1030 = vmul.f32 %v1005, %v1014
        %v1031 = vmul.f32 %v1007, %v1015
        %v1032 = vmax.f32 %v952, 0.0
        %v1033 = vmax.f32 %v953, 0.0
        %v1034 = vmax.f32 %v954, 0.0
        %v1035 = vmax.f32 %v955, 0.0
        %v1036 = vmax.f32 %v956, 0.0
        %v1037 = vmax.f32 %v957, 0.0
        %v1038 = vmax.f32 %v958, 0.0
        %v1039 = vmax.f32 %v959, 0.0
        %v1040 = vand.u32 2147483647, %v952
        %v1041 = vand.u32 2147483647, %v953
        %v1042 = vand.u32 2147483647, %v954
        %v1043 = vand.u32 2147483647, %v955
        %v1044 = vand.u32 2147483647, %v956
        %v1045 = vand.u32 2147483647, %v957
        %v1046 = vand.u32 2147483647, %v958
        %v1047 = vand.u32 2147483647, %v959
        %v1048 = vsub.f32 0.0, %v1040
        %v1049 = vsub.f32 0.0, %v1041
        %v1050 = vsub.f32 0.0, %v1042
        %v1051 = vsub.f32 0.0, %v1043
        %v1052 = vsub.f32 0.0, %v1044
        %v1053 = vsub.f32 0.0, %v1045
        %v1054 = vsub.f32 0.0, %v1046
        %v1055 = vsub.f32 0.0, %v1047
        %v1056 = vmul.f32 %v1048, 1.442695
        %v1057 = vpow.pop %v1056
        %v1058 = vmul.f32 %v1049, 1.442695
        %v1059 = vpow.pop %v1058
        %v1060 = vmul.f32 %v1050, 1.442695
        %v1061 = vpow.pop %v1060
        %v1062 = vmul.f32 %v1051, 1.442695
        %v1063 = vpow.pop %v1062
        %v1064 = vmul.f32 %v1052, 1.442695
        %v1065 = vpow.pop %v1064
        %v1066 = vmul.f32 %v1053, 1.442695
        %v1067 = vpow.pop %v1066
        %v1068 = vmul.f32 %v1054, 1.442695
        %v1069 = vpow.pop %v1068
        %v1070 = vmul.f32 %v1055, 1.442695
        %v1071 = vpow.pop %v1070
        %v1072 = vadd.f32 %v1057, 1.0
        %v1073 = vlog2.pop %v1072
        %v1074 = vmul.f32 %v1073, 0.6931472
        %v1075 = vmul.f32 -0.5, %v1057
        %v1076 = vadd.f32 %v1075, 1.0
        %v1077 = vmul.f32 %v1076, %v1057
        %v1078 = vand.u32 2147483647, %v1057
        %vm1079 = vcmp.lt.f32.partialorder %v1078, 0.0004427343
        %v1080 = vsel %vm1079, %v1077, %v1074
        %v1081 = vadd.f32 %v1059, 1.0
        %v1082 = vlog2.pop %v1081
        %v1083 = vmul.f32 %v1082, 0.6931472
        %v1084 = vmul.f32 -0.5, %v1059
        %v1085 = vadd.f32 %v1084, 1.0
        %v1086 = vmul.f32 %v1085, %v1059
        %v1087 = vand.u32 2147483647, %v1059
        %vm1088 = vcmp.lt.f32.partialorder %v1087, 0.0004427343
        %v1089 = vsel %vm1088, %v1086, %v1083
        %v1090 = vadd.f32 %v1061, 1.0
        %v1091 = vlog2.pop %v1090
        %v1092 = vmul.f32 %v1091, 0.6931472
        %v1093 = vmul.f32 -0.5, %v1061
        %v1094 = vadd.f32 %v1093, 1.0
        %v1095 = vmul.f32 %v1094, %v1061
        %v1096 = vand.u32 2147483647, %v1061
        %vm1097 = vcmp.lt.f32.partialorder %v1096, 0.0004427343
        %v1098 = vsel %vm1097, %v1095, %v1092
        %v1099 = vadd.f32 %v1063, 1.0
        %v1100 = vlog2.pop %v1099
        %v1101 = vmul.f32 %v1100, 0.6931472
        %v1102 = vmul.f32 -0.5, %v1063
        %v1103 = vadd.f32 %v1102, 1.0
        %v1104 = vmul.f32 %v1103, %v1063
        %v1105 = vand.u32 2147483647, %v1063
        %vm1106 = vcmp.lt.f32.partialorder %v1105, 0.0004427343
        %v1107 = vsel %vm1106, %v1104, %v1101
        %v1108 = vadd.f32 %v1065, 1.0
        %v1109 = vlog2.pop %v1108
        %v1110 = vmul.f32 %v1109, 0.6931472
        %v1111 = vmul.f32 -0.5, %v1065
        %v1112 = vadd.f32 %v1111, 1.0
        %v1113 = vmul.f32 %v1112, %v1065
        %v1114 = vand.u32 2147483647, %v1065
        %vm1115 = vcmp.lt.f32.partialorder %v1114, 0.0004427343
        %v1116 = vsel %vm1115, %v1113, %v1110
        %v1117 = vadd.f32 %v1067, 1.0
        %v1118 = vlog2.pop %v1117
        %v1119 = vmul.f32 %v1118, 0.6931472
        %v1120 = vmul.f32 -0.5, %v1067
        %v1121 = vadd.f32 %v1120, 1.0
        %v1122 = vmul.f32 %v1121, %v1067
        %v1123 = vand.u32 2147483647, %v1067
        %vm1124 = vcmp.lt.f32.partialorder %v1123, 0.0004427343
        %v1125 = vsel %vm1124, %v1122, %v1119
        %v1126 = vadd.f32 %v1069, 1.0
        %v1127 = vlog2.pop %v1126
        %v1128 = vmul.f32 %v1127, 0.6931472
        %v1129 = vmul.f32 -0.5, %v1069
        %v1130 = vadd.f32 %v1129, 1.0
        %v1131 = vmul.f32 %v1130, %v1069
        %v1132 = vand.u32 2147483647, %v1069
        %vm1133 = vcmp.lt.f32.partialorder %v1132, 0.0004427343
        %v1134 = vsel %vm1133, %v1131, %v1128
        %v1135 = vadd.f32 %v1071, 1.0
        %v1136 = vlog2.pop %v1135
        %v1137 = vmul.f32 %v1136, 0.6931472
        %v1138 = vmul.f32 -0.5, %v1071
        %v1139 = vadd.f32 %v1138, 1.0
        %v1140 = vmul.f32 %v1139, %v1071
        %v1141 = vand.u32 2147483647, %v1071
        %vm1142 = vcmp.lt.f32.partialorder %v1141, 0.0004427343
        %v1143 = vsel %vm1142, %v1140, %v1137
        %v1144 = vadd.f32 %v1032, %v1080
        %v1145 = vadd.f32 %v1033, %v1089
        %v1146 = vadd.f32 %v1034, %v1098
        %v1147 = vadd.f32 %v1035, %v1107
        %v1148 = vadd.f32 %v1036, %v1116
        %v1149 = vadd.f32 %v1037, %v1125
        %v1150 = vadd.f32 %v1038, %v1134
        %v1151 = vadd.f32 %v1039, %v1143
        %v1152 = vmul.f32 %v993, %v952
        %v1153 = vmul.f32 %v995, %v953
        %v1154 = vmul.f32 %v997, %v954
        %v1155 = vmul.f32 %v999, %v955
        %v1156 = vmul.f32 %v1001, %v956
        %v1157 = vmul.f32 %v1003, %v957
        %v1158 = vmul.f32 %v1005, %v958
        %v1159 = vmul.f32 %v1007, %v959
        %v1160 = vsub.f32 %v1144, %v1152
        %v1161 = vsub.f32 %v1145, %v1153
        %v1162 = vsub.f32 %v1146, %v1154
        %v1163 = vsub.f32 %v1147, %v1155
        %v1164 = vsub.f32 %v1148, %v1156
        %v1165 = vsub.f32 %v1149, %v1157
        %v1166 = vsub.f32 %v1150, %v1158
        %v1167 = vsub.f32 %v1151, %v1159
        %vm1176 = vcmask 1041409
        %v1177 = vsel %vm1176, %v1161, %v1160
        %vm1178 = vcmask 1042434
        %v1179 = vsel %vm1178, %v1162, %v1177
        %vm1180 = vcmask 1043459
        %v1181 = vsel %vm1180, %v1163, %v1179
        %vm1182 = vcmask 1044484
        %v1183 = vsel %vm1182, %v1164, %v1181
        %vm1184 = vcmask 1045509
        %v1185 = vsel %vm1184, %v1165, %v1183
        %vm1186 = vcmask 1046534
        %v1187 = vsel %vm1186, %v1166, %v1185
        %vm1188 = vcmask 1047559
        %v1189 = vsel %vm1188, %v1167, %v1187
        %v1191 = vmul.f32 %v571, %v1189
        %v1200 = vsel %vm1176, %v995, %v993
        %v1201 = vsel %vm1178, %v997, %v1200
        %v1202 = vsel %vm1180, %v999, %v1201
        %v1203 = vsel %vm1182, %v1001, %v1202
        %v1204 = vsel %vm1184, %v1003, %v1203
        %v1205 = vsel %vm1186, %v1005, %v1204
        %v1206 = vsel %vm1188, %v1007, %v1205
        %1208 = vst.msk [vmem:[%s316] sm:$0xff] %vm846, %v1206
        %v1217 = vrot.slane %v1025, 7
        %v1218 = vsel %vm1176, %v1217, %v1024
        %v1219 = vrot.slane %v1026, 6
        %v1220 = vsel %vm1178, %v1219, %v1218
        %v1221 = vrot.slane %v1027, 5
        %v1222 = vsel %vm1180, %v1221, %v1220
        %v1223 = vrot.slane %v1028, 4
        %v1224 = vsel %vm1182, %v1223, %v1222
        %v1225 = vrot.slane %v1029, 3
        %v1226 = vsel %vm1184, %v1225, %v1224
        %v1227 = vrot.slane %v1030, 2
        %v1228 = vsel %vm1186, %v1227, %v1226
        %v1229 = vrot.slane %v1031, 1
        %v1230 = vsel %vm1188, %v1229, %v1228
        %1232 = vst.msk [vmem:[%s345] sm:$0xff] %vm846, %v1230
        %1233 = vst.msk [vmem:[%s352] sm:$0xff] %vm846, %v1191
        %s1234 = sand.u32 %s177, 1
        %s1235 = scalar_lea.sflag [#allocation6], %s1234
        %s1236 = sand.u32 %s177, 1
        %s1237 = smul.addr %s1236, 8
        %s1238 = scalar_lea.vmem [#allocation5], %s1237
        %p1239 = scmp.lt.s32.totalorder %s28, 1
        %s1240 = scalar_select %p1239, %s28, 1
        %p1241 = scmp.lt.s32.totalorder %s29, 0
        %s1242 = scalar_select %p1241, %s29, 0
        %s1243 = sadd.s32 %s1242, %s1240
        %s1244 = smul.addr %s1243, 8
        %s1245 = scalar_lea.vmem %s7, %s1244
        %p1246 = scmp.lt.s32.totalorder %s28, 1
        %s1247 = scalar_select %p1246, %s28, 1
        %p1248 = scmp.lt.s32.totalorder %s29, 0
        %s1249 = scalar_select %p1248, %s29, 0
        %s1250 = sadd.s32 %s1249, %s1247
        %s1251 = smul.addr %s1250, 8
        %s1252 = scalar_lea.vmem %s8, %s1251
        // Predicated region
        $region49: #{single_layer_decoder_forward.1} parent=43 // pred_check
          %p1253 = pneg %p187
        $region50: #{single_layer_decoder_forward.1} parent=43 // pred_check_branch
          %1255 = sbr.rel (%p1253) target = $region52
        $region51: #{single_layer_decoder_forward.1} parent=43 // pred_region
          %s1257 = ssub.s32 128, 128
          %1258 = vsyncadd %s1235, %s1257
          %s1259 = sadd.s32 %s29, %s28
          %s1260 = smul.addr %s1259, 128
          %s1261 = scalar_lea.hbm %s6, %s1260
          %s1263 = sshll.u32 %s1238, 4
          %s1264 = int_to_ptr.vmem [resolvable:$true] %s1263
          %1266 = dma.vmem_to_hbm [thread:$0]  %s1264, 128, %s1261, %s1235
        $region52: #{single_layer_decoder_forward.1} parent=43 // pred_fallthru
          _
        // Predicated region
        $region53: #{single_layer_decoder_forward.1} parent=43 // pred_check
          %p1267 = pneg %p215
        $region54: #{single_layer_decoder_forward.1} parent=43 // pred_check_branch
          %1269 = sbr.rel (%p1267) target = $region56
        $region55: #{single_layer_decoder_forward.1} parent=43 // pred_region
          _
        $region56: #{single_layer_decoder_forward.1} parent=43 // pred_fallthru
          _
        // Predicated region
        $region57: #{single_layer_decoder_forward.1} parent=43 // pred_check
          %p1270 = pneg %p243
        $region58: #{single_layer_decoder_forward.1} parent=43 // pred_check_branch
          %1272 = sbr.rel (%p1270) target = $region60
        $region59: #{single_layer_decoder_forward.1} parent=43 // pred_region
          _
        $region60: #{single_layer_decoder_forward.1} parent=43 // pred_fallthru
          _
      $region44: #{single_layer_decoder_forward.1} parent=5 // pred_fallthru
        _
      %p1273 = scmp.le.s32.totalorder 2, %s19
      // Predicated region
      $region61: #{single_layer_decoder_forward.1} parent=5 // pred_check
        %p1274 = pneg %p1273
      $region62: #{single_layer_decoder_forward.1} parent=5 // pred_check_branch
        %1276 = sbr.rel (%p1274) target = $region64
      $region63: #{single_layer_decoder_forward.1} parent=5 // pred_region
        %s1277 = ssub.s32 %s19, 2
        // Predicated region
        $region65: #{single_layer_decoder_forward.1} parent=63 // pred_check
          %p1278 = pneg %p193
        $region66: #{single_layer_decoder_forward.1} parent=63 // pred_check_branch
          %1280 = sbr.rel (%p1278) target = $region68
        $region67: #{single_layer_decoder_forward.1} parent=63 // pred_region
          %s1281 = sand.u32 %s178, 1
          %s1282 = scalar_lea.sflag [#allocation6], %s1281
          %s1283 = sand.u32 %s178, 1
          %s1284 = smul.addr %s1283, 8
          %s1285 = scalar_lea.vmem [#allocation5], %s1284
          %1286 = dma.done %s1282, 128
        $region68: #{single_layer_decoder_forward.1} parent=63 // pred_fallthru
          _
        // Predicated region
        $region69: #{single_layer_decoder_forward.1} parent=63 // pred_check
          %p1287 = pneg %p221
        $region70: #{single_layer_decoder_forward.1} parent=63 // pred_check_branch
          %1289 = sbr.rel (%p1287) target = $region72
        $region71: #{single_layer_decoder_forward.1} parent=63 // pred_region
          %p1290 = scmp.lt.s32.totalorder %s30, 1
          %s1291 = scalar_select %p1290, %s30, 1
          %p1292 = scmp.lt.s32.totalorder %s31, 0
          %s1293 = scalar_select %p1292, %s31, 0
          %s1294 = sadd.s32 %s1293, %s1291
          %s1295 = smul.addr %s1294, 8
          %s1296 = scalar_lea.vmem %s7, %s1295
        $region72: #{single_layer_decoder_forward.1} parent=63 // pred_fallthru
          _
        // Predicated region
        $region73: #{single_layer_decoder_forward.1} parent=63 // pred_check
          %p1297 = pneg %p249
        $region74: #{single_layer_decoder_forward.1} parent=63 // pred_check_branch
          %1299 = sbr.rel (%p1297) target = $region76
        $region75: #{single_layer_decoder_forward.1} parent=63 // pred_region
          %p1300 = scmp.lt.s32.totalorder %s30, 1
          %s1301 = scalar_select %p1300, %s30, 1
          %p1302 = scmp.lt.s32.totalorder %s31, 0
          %s1303 = scalar_select %p1302, %s31, 0
          %s1304 = sadd.s32 %s1303, %s1301
          %s1305 = smul.addr %s1304, 8
          %s1306 = scalar_lea.vmem %s8, %s1305
        $region76: #{single_layer_decoder_forward.1} parent=63 // pred_fallthru
          _
      $region64: #{single_layer_decoder_forward.1} parent=5 // pred_fallthru
        _
    $region6: #{single_layer_decoder_forward.1} parent=1 // loop_footer
      %s23 = sadd.s32 1, %s19
    $region7: #{single_layer_decoder_forward.1} parent=1 // loop_footer_branch
      %18 = sbr.rel target = $region3
    $region8: #{single_layer_decoder_forward.1} parent=1 // loop_exit
      _
    %1307 = vsyncpa [#allocation6], 1
    %s1308 = scalar_lea.sflag [#allocation6], 1
    %1309 = vsyncpa %s1308, 1

</llo_original>
